<compile_context>
chip_gen: v7x
topology: tpu7x:2x2x1
jax: 0.10.0
libtpu: 0.0.40
codegen_flags: <defaults>
</compile_context>

<pallas_src>
import functools
import math

import jax
import jax.numpy as jnp
from jax.experimental import pallas as pl
from jax.experimental.pallas import tpu as pltpu


def _select_attachment_kernel(idx_ref, h_ref, aproj_ref,
                              w1h_ref, w2_ref, b2_ref, w3_ref, b3_ref,
                              w4row_ref, b4_ref,
                              out_ref, *, threshold_logit):
    tile = idx_ref.shape[0]
    n_mols = aproj_ref.shape[0]

    # --- torch.index_select(mol_a_reprs, 0, b_batch_indices), fused into L1 ---
    # Gather of the pre-projected mol-A table (a_proj = A @ W1_a + b1) via a
    # one-hot matmul so it runs on the MXU (indices may be arbitrary).
    idx = idx_ref[...]                                               # (tile, 1)
    onehot = (idx == jax.lax.broadcasted_iota(jnp.int32, (tile, n_mols), 1)
              ).astype(jnp.bfloat16)                                 # (tile, B)
    a_contrib = jnp.dot(onehot, aproj_ref[...],
                        preferred_element_type=jnp.float32)          # (tile, 256)

    # --- layer 1: relu(h @ W1_h + a_contrib)  (concat eliminated) -------------
    # f32 -> bf16 cast of the hidden block happens here (free VPU op) instead
    # of a wrapper-side full HBM pass.
    h_bf = h_ref[...].astype(jnp.bfloat16)
    x = jnp.dot(h_bf, w1h_ref[...],
                preferred_element_type=jnp.float32) + a_contrib
    x = jnp.maximum(x, 0.0)

    # --- layers 2 & 3: Lin -> ReLU --------------------------------------------
    x = jnp.maximum(
        jnp.dot(x.astype(jnp.bfloat16), w2_ref[...],
                preferred_element_type=jnp.float32) + b2_ref[...], 0.0)
    x = jnp.maximum(
        jnp.dot(x.astype(jnp.bfloat16), w3_ref[...],
                preferred_element_type=jnp.float32) + b3_ref[...], 0.0)

    # --- final (64 -> 1) layer + sigmoid + threshold ---------------------------
    # sigmoid is monotonic, so sigmoid(logit) >= t  <=>  logit >= logit(t);
    # the N=1 matmul is replaced by a VPU multiply + lane reduction.
    logits = jnp.sum(x * w4row_ref[...], axis=-1, keepdims=True) + b4_ref[...]
    out_ref[...] = (logits >= threshold_logit).astype(jnp.int32)


def _choose_atom_tile(n_atoms, max_tile):
    """Pick the atom tile: big (amortize per-step overhead), never larger than
    the sublane-rounded atom count, and >= 2 grid steps when there is enough
    work (so v7x's two TensorCores both get a share of the 'parallel' axis)."""
    n_sub = -(-n_atoms // 8) * 8                      # round up to sublane mult
    if n_sub <= max_tile:
        if n_sub >= 512:                              # enough work to split
            half = -(-n_atoms // 2)
            return -(-half // 8) * 8                  # grid of 2 tiles
        return n_sub                                  # single small tile
    return max_tile                                   # grid = cdiv >= 2


def select_mol_attachment(mol_a_reprs, b_atom_hidden, b_batch_indices, params,
                          *, threshold, atom_tile=1024):
    n_atoms, h_dim = b_atom_hidden.shape
    n_mols, ma_dim = mol_a_reprs.shape
    w1, b1, w2, b2, w3, b3, w4, b4 = params
    assert w1.shape[0] == h_dim + ma_dim

    # Split W1: rows [0, H) act on the atom hidden, rows [H, H+MA) on mol_a.
    # Pre-project mol_a_reprs through W1_a once per molecule and fold in b1
    # (B << N_atoms, so this is tiny).
    w1_h = w1[:h_dim]                                            # (H, 256)
    w1_a = w1[h_dim:]                                            # (MA, 256)
    a_proj = (jnp.dot(mol_a_reprs.astype(jnp.float32),
                      w1_a.astype(jnp.float32))
              + b1.reshape(1, -1).astype(jnp.float32))           # (B, 256)

    atom_tile = _choose_atom_tile(n_atoms, atom_tile)
    grid = (pl.cdiv(n_atoms, atom_tile),)

    # No padding and no wrapper-side bf16 cast of the big hidden array: the
    # ragged last block is handled by Pallas (garbage rows are dropped on the
    # masked output write), and the f32->bf16 cast happens in-kernel.
    idx2d = b_batch_indices.astype(jnp.int32).reshape(n_atoms, 1)
    hid_f32 = b_atom_hidden.astype(jnp.float32)

    # Small/resident operands: bf16 weights, f32 biases.
    a_proj_bf = a_proj.astype(jnp.bfloat16)                      # (B, 256)
    w1_h_bf = w1_h.astype(jnp.bfloat16)
    w2_bf = w2.astype(jnp.bfloat16)
    w3_bf = w3.astype(jnp.bfloat16)
    w4_row = w4.reshape(1, -1).astype(jnp.float32)               # (1, 64)
    b2_f = b2.reshape(1, -1).astype(jnp.float32)
    b3_f = b3.reshape(1, -1).astype(jnp.float32)
    b4_f = b4.reshape(1, -1).astype(jnp.float32)

    # logit(threshold), guarded against threshold in {0, 1}.
    t = float(threshold)
    if t <= 0.0:
        threshold_logit = -float("inf")
    elif t >= 1.0:
        threshold_logit = float("inf")
    else:
        threshold_logit = math.log(t / (1.0 - t))

    def full_spec(shape):
        return pl.BlockSpec(shape, lambda i: (0, 0))

    out = pl.pallas_call(
        functools.partial(_select_attachment_kernel,
                          threshold_logit=threshold_logit),
        out_shape=jax.ShapeDtypeStruct((n_atoms, 1), jnp.int32),
        grid=grid,
        in_specs=[
            pl.BlockSpec((atom_tile, 1), lambda i: (i, 0)),       # batch indices
            pl.BlockSpec((atom_tile, h_dim), lambda i: (i, 0)),   # atom hiddens
            full_spec(a_proj_bf.shape),                           # (B, 256)
            full_spec(w1_h_bf.shape),
            full_spec(w2_bf.shape), full_spec(b2_f.shape),
            full_spec(w3_bf.shape), full_spec(b3_f.shape),
            full_spec(w4_row.shape), full_spec(b4_f.shape),
        ],
        out_specs=pl.BlockSpec((atom_tile, 1), lambda i: (i, 0)),
        compiler_params=pltpu.CompilerParams(
            dimension_semantics=("parallel",)),
    )(idx2d, hid_f32, a_proj_bf, w1_h_bf, w2_bf, b2_f, w3_bf, b3_f,
      w4_row, b4_f)

    # boolean selection mask, shape (N_atoms, 1), matches torch `>=` result
    return out != 0


def _init_linear(key, fan_in, fan_out):
    """Deterministic PyTorch-default-style init (uniform +- 1/sqrt(fan_in))."""
    kw, kb = jax.random.split(key)
    lim = 1.0 / float(fan_in) ** 0.5
    w = jax.random.uniform(kw, (fan_in, fan_out), jnp.float32, -lim, lim)
    b = jax.random.uniform(kb, (1, fan_out), jnp.float32, -lim, lim)
    return w, b


if __name__ == "__main__":
    # Small deterministic shapes.
    B_MOLS = 2          # number of A molecules
    MOL_A_DIM = 32      # mol_a_dim
    NODE_HIDDEN = 32    # mol_b_node_hidden_dim
    N_ATOMS = 16        # total batched B atoms
    THRESHOLD = 0.5     # select_motif_atom_threshold

    key = jax.random.PRNGKey(0)
    k_a, k_h, k1, k2, k3, k4 = jax.random.split(key, 6)

    mol_a_reprs = jax.random.normal(k_a, (B_MOLS, MOL_A_DIM), jnp.float32)
    b_atom_hidden = jax.random.normal(k_h, (N_ATOMS, NODE_HIDDEN), jnp.float32)
    # atoms 0..7 belong to mol 0, atoms 8..15 to mol 1
    b_batch_indices = jnp.concatenate(
        [jnp.zeros((N_ATOMS // 2,), jnp.int32),
         jnp.ones((N_ATOMS // 2,), jnp.int32)])

    params = []
    params += _init_linear(k1, NODE_HIDDEN + MOL_A_DIM, 256)
    params += _init_linear(k2, 256, 128)
    params += _init_linear(k3, 128, 64)
    params += _init_linear(k4, 64, 1)
    params = tuple(params)

    selected = select_mol_attachment(
        mol_a_reprs, b_atom_hidden, b_batch_indices, params,
        threshold=THRESHOLD)
    selected = jax.block_until_ready(selected)

    assert selected.shape == (N_ATOMS, 1) and selected.dtype == jnp.bool_
    print("KERNEL_OK")
</pallas_src>

<mosaic_0001>
module attributes {stable_mosaic.version = 11 : i64} {
  func.func @_select_attachment_kernel(%arg0: i32, %arg1: memref<16x1xi32, #tpu.memory_space<vmem>>, %arg2: memref<16x32xf32, #tpu.memory_space<vmem>>, %arg3: memref<2x256xbf16, #tpu.memory_space<vmem>>, %arg4: memref<32x256xbf16, #tpu.memory_space<vmem>>, %arg5: memref<256x128xbf16, #tpu.memory_space<vmem>>, %arg6: memref<1x128xf32, #tpu.memory_space<vmem>>, %arg7: memref<128x64xbf16, #tpu.memory_space<vmem>>, %arg8: memref<1x64xf32, #tpu.memory_space<vmem>>, %arg9: memref<1x64xf32, #tpu.memory_space<vmem>>, %arg10: memref<1x1xf32, #tpu.memory_space<vmem>>, %arg11: memref<16x1xi32, #tpu.memory_space<vmem>>) attributes {dimension_semantics = [#tpu.dimension_semantics<parallel>], iteration_bounds = array<i64: 1>, scalar_prefetch = 0 : i64, scratch_operands = 0 : i64, tpu.core_type = #tpu.core_type<tc>, window_params = [{transform_indices = @transform_0, window_bounds = array<i64: 16, 1>}, {transform_indices = @transform_1, window_bounds = array<i64: 16, 32>}, {pipeline_mode = #tpu.pipeline_mode<synchronous>, transform_indices = @transform_2, window_bounds = array<i64: 2, 256>}, {pipeline_mode = #tpu.pipeline_mode<synchronous>, transform_indices = @transform_3, window_bounds = array<i64: 32, 256>}, {pipeline_mode = #tpu.pipeline_mode<synchronous>, transform_indices = @transform_4, window_bounds = array<i64: 256, 128>}, {pipeline_mode = #tpu.pipeline_mode<synchronous>, transform_indices = @transform_5, window_bounds = array<i64: 1, 128>}, {pipeline_mode = #tpu.pipeline_mode<synchronous>, transform_indices = @transform_6, window_bounds = array<i64: 128, 64>}, {pipeline_mode = #tpu.pipeline_mode<synchronous>, transform_indices = @transform_7, window_bounds = array<i64: 1, 64>}, {pipeline_mode = #tpu.pipeline_mode<synchronous>, transform_indices = @transform_8, window_bounds = array<i64: 1, 64>}, {pipeline_mode = #tpu.pipeline_mode<synchronous>, transform_indices = @transform_9, window_bounds = array<i64: 1, 1>}, {transform_indices = @transform_10, window_bounds = array<i64: 16, 1>}]} {
    %c0 = arith.constant 0 : index
    %c0_0 = arith.constant 0 : index
    %0 = vector.load %arg1[%c0, %c0_0] : memref<16x1xi32, #tpu.memory_space<vmem>>, vector<16x1xi32>
    %1 = tpu.iota {dimensions = array<i32: 1>} : vector<16x2xi32>
    %2 = vector.broadcast %0 : vector<16x1xi32> to vector<16x2xi32>
    %3 = arith.cmpi eq, %2, %1 : vector<16x2xi32>
    %4 = arith.extui %3 : vector<16x2xi1> to vector<16x2xi32>
    %5 = arith.sitofp %4 : vector<16x2xi32> to vector<16x2xf32>
    %6 = arith.truncf %5 : vector<16x2xf32> to vector<16x2xbf16>
    %c0_1 = arith.constant 0 : index
    %c0_2 = arith.constant 0 : index
    %7 = vector.load %arg3[%c0_1, %c0_2] : memref<2x256xbf16, #tpu.memory_space<vmem>>, vector<2x256xbf16>
    %cst = arith.constant dense<0.000000e+00> : vector<16x256xf32>
    %8 = tpu.matmul %6, %7, %cst {dimension_numbers = #tpu.dot_dimension_numbers<[1], [0], [0], [1], [0, 0, 1, 1], [], []>} : vector<16x2xbf16>, vector<2x256xbf16>, vector<16x256xf32> -> vector<16x256xf32>
    %c0_3 = arith.constant 0 : index
    %c0_4 = arith.constant 0 : index
    %9 = vector.load %arg2[%c0_3, %c0_4] : memref<16x32xf32, #tpu.memory_space<vmem>>, vector<16x32xf32>
    %10 = arith.truncf %9 : vector<16x32xf32> to vector<16x32xbf16>
    %c0_5 = arith.constant 0 : index
    %c0_6 = arith.constant 0 : index
    %11 = vector.load %arg4[%c0_5, %c0_6] : memref<32x256xbf16, #tpu.memory_space<vmem>>, vector<32x256xbf16>
    %cst_7 = arith.constant dense<0.000000e+00> : vector<16x256xf32>
    %12 = tpu.matmul %10, %11, %cst_7 {dimension_numbers = #tpu.dot_dimension_numbers<[1], [0], [0], [1], [0, 0, 1, 1], [], []>} : vector<16x32xbf16>, vector<32x256xbf16>, vector<16x256xf32> -> vector<16x256xf32>
    %13 = arith.addf %12, %8 : vector<16x256xf32>
    %cst_8 = arith.constant 0.000000e+00 : f32
    %14 = vector.broadcast %cst_8 : f32 to vector<16x256xf32>
    %15 = arith.maximumf %13, %14 : vector<16x256xf32>
    %16 = arith.truncf %15 : vector<16x256xf32> to vector<16x256xbf16>
    %c0_9 = arith.constant 0 : index
    %c0_10 = arith.constant 0 : index
    %17 = vector.load %arg5[%c0_9, %c0_10] : memref<256x128xbf16, #tpu.memory_space<vmem>>, vector<256x128xbf16>
    %cst_11 = arith.constant dense<0.000000e+00> : vector<16x128xf32>
    %18 = tpu.matmul %16, %17, %cst_11 {dimension_numbers = #tpu.dot_dimension_numbers<[1], [0], [0], [1], [0, 0, 1, 1], [], []>} : vector<16x256xbf16>, vector<256x128xbf16>, vector<16x128xf32> -> vector<16x128xf32>
    %c0_12 = arith.constant 0 : index
    %c0_13 = arith.constant 0 : index
    %19 = vector.load %arg6[%c0_12, %c0_13] : memref<1x128xf32, #tpu.memory_space<vmem>>, vector<1x128xf32>
    %20 = vector.broadcast %19 : vector<1x128xf32> to vector<16x128xf32>
    %21 = arith.addf %18, %20 : vector<16x128xf32>
    %cst_14 = arith.constant 0.000000e+00 : f32
    %22 = vector.broadcast %cst_14 : f32 to vector<16x128xf32>
    %23 = arith.maximumf %21, %22 : vector<16x128xf32>
    %24 = arith.truncf %23 : vector<16x128xf32> to vector<16x128xbf16>
    %c0_15 = arith.constant 0 : index
    %c0_16 = arith.constant 0 : index
    %25 = vector.load %arg7[%c0_15, %c0_16] : memref<128x64xbf16, #tpu.memory_space<vmem>>, vector<128x64xbf16>
    %cst_17 = arith.constant dense<0.000000e+00> : vector<16x64xf32>
    %26 = tpu.matmul %24, %25, %cst_17 {dimension_numbers = #tpu.dot_dimension_numbers<[1], [0], [0], [1], [0, 0, 1, 1], [], []>} : vector<16x128xbf16>, vector<128x64xbf16>, vector<16x64xf32> -> vector<16x64xf32>
    %c0_18 = arith.constant 0 : index
    %c0_19 = arith.constant 0 : index
    %27 = vector.load %arg8[%c0_18, %c0_19] : memref<1x64xf32, #tpu.memory_space<vmem>>, vector<1x64xf32>
    %28 = vector.broadcast %27 : vector<1x64xf32> to vector<16x64xf32>
    %29 = arith.addf %26, %28 : vector<16x64xf32>
    %cst_20 = arith.constant 0.000000e+00 : f32
    %30 = vector.broadcast %cst_20 : f32 to vector<16x64xf32>
    %31 = arith.maximumf %29, %30 : vector<16x64xf32>
    %c0_21 = arith.constant 0 : index
    %c0_22 = arith.constant 0 : index
    %32 = vector.load %arg9[%c0_21, %c0_22] : memref<1x64xf32, #tpu.memory_space<vmem>>, vector<1x64xf32>
    %33 = vector.broadcast %32 : vector<1x64xf32> to vector<16x64xf32>
    %34 = arith.mulf %31, %33 : vector<16x64xf32>
    %cst_23 = arith.constant dense<0.000000e+00> : vector<16xf32>
    %35 = vector.multi_reduction <add>, %34, %cst_23 [1] : vector<16x64xf32> to vector<16xf32>
    %36 = vector.shape_cast %35 : vector<16xf32> to vector<16x1xf32>
    %c0_24 = arith.constant 0 : index
    %c0_25 = arith.constant 0 : index
    %37 = vector.load %arg10[%c0_24, %c0_25] : memref<1x1xf32, #tpu.memory_space<vmem>>, vector<1x1xf32>
    %38 = vector.broadcast %37 : vector<1x1xf32> to vector<16x1xf32>
    %39 = arith.addf %36, %38 : vector<16x1xf32>
    %cst_26 = arith.constant 0.000000e+00 : f32
    %40 = vector.broadcast %cst_26 : f32 to vector<16x1xf32>
    %41 = arith.cmpf oge, %39, %40 : vector<16x1xf32>
    %42 = arith.extui %41 : vector<16x1xi1> to vector<16x1xi32>
    %c0_27 = arith.constant 0 : index
    %c0_28 = arith.constant 0 : index
    %43 = vector.load %arg11[%c0_27, %c0_28] : memref<16x1xi32, #tpu.memory_space<vmem>>, vector<16x1xi32>
    tpu.vector_store %arg11[%c0_27, %c0_28], %42 {strides = array<i32>} : memref<16x1xi32, #tpu.memory_space<vmem>>, vector<16x1xi32>,
    return
  }
  func.func @transform_0(%arg0: i32) -> (i32, i32) {
    %c0_i32 = arith.constant 0 : i32
    %c0_i32_0 = arith.constant 0 : i32
    return %arg0, %c0_i32 : i32, i32
  }
  func.func @transform_1(%arg0: i32) -> (i32, i32) {
    %c0_i32 = arith.constant 0 : i32
    %c0_i32_0 = arith.constant 0 : i32
    return %arg0, %c0_i32 : i32, i32
  }
  func.func @transform_2(%arg0: i32) -> (i32, i32) {
    %c0_i32 = arith.constant 0 : i32
    %c0_i32_0 = arith.constant 0 : i32
    %c0_i32_1 = arith.constant 0 : i32
    return %c0_i32, %c0_i32_0 : i32, i32
  }
  func.func @transform_3(%arg0: i32) -> (i32, i32) {
    %c0_i32 = arith.constant 0 : i32
    %c0_i32_0 = arith.constant 0 : i32
    %c0_i32_1 = arith.constant 0 : i32
    return %c0_i32, %c0_i32_0 : i32, i32
  }
  func.func @transform_4(%arg0: i32) -> (i32, i32) {
    %c0_i32 = arith.constant 0 : i32
    %c0_i32_0 = arith.constant 0 : i32
    %c0_i32_1 = arith.constant 0 : i32
    return %c0_i32, %c0_i32_0 : i32, i32
  }
  func.func @transform_5(%arg0: i32) -> (i32, i32) {
    %c0_i32 = arith.constant 0 : i32
    %c0_i32_0 = arith.constant 0 : i32
    %c0_i32_1 = arith.constant 0 : i32
    return %c0_i32, %c0_i32_0 : i32, i32
  }
  func.func @transform_6(%arg0: i32) -> (i32, i32) {
    %c0_i32 = arith.constant 0 : i32
    %c0_i32_0 = arith.constant 0 : i32
    %c0_i32_1 = arith.constant 0 : i32
    return %c0_i32, %c0_i32_0 : i32, i32
  }
  func.func @transform_7(%arg0: i32) -> (i32, i32) {
    %c0_i32 = arith.constant 0 : i32
    %c0_i32_0 = arith.constant 0 : i32
    %c0_i32_1 = arith.constant 0 : i32
    return %c0_i32, %c0_i32_0 : i32, i32
  }
  func.func @transform_8(%arg0: i32) -> (i32, i32) {
    %c0_i32 = arith.constant 0 : i32
    %c0_i32_0 = arith.constant 0 : i32
    %c0_i32_1 = arith.constant 0 : i32
    return %c0_i32, %c0_i32_0 : i32, i32
  }
  func.func @transform_9(%arg0: i32) -> (i32, i32) {
    %c0_i32 = arith.constant 0 : i32
    %c0_i32_0 = arith.constant 0 : i32
    %c0_i32_1 = arith.constant 0 : i32
    return %c0_i32, %c0_i32_0 : i32, i32
  }
  func.func @transform_10(%arg0: i32) -> (i32, i32) {
    %c0_i32 = arith.constant 0 : i32
    %c0_i32_0 = arith.constant 0 : i32
    return %arg0, %c0_i32 : i32, i32
  }
}

</mosaic_0001>

<llo_original>
// kernel: tpu_custom_call.1
$region0: #{tpu_custom_call.1}
  #allocation0 [shape = 'u32[]', space=smem, size = 0x4, offset = 0x4, fixed_abs, tag = 'smem constant byte address 0x4 - core index']
  #allocation1 [shape = 'u32[144,128]{1,0:T(1,128)}', space=vmem, size = 0x12000, scoped, tag = 'internal scratch']
  #allocation2 [shape = 'f32[1,1]{1,0:T(1,128)S(1)}', space=vmem, size = 0x200, scoped, tag = 'scoped memory for tpu_custom_call.1']
  %s0 = inlined_call_operand.vmem [shape: s32[16,1], index: 0, kind: input, shape index: {}]
  %s1 = inlined_call_operand.hbm [shape: f32[16,32], index: 1, kind: input, shape index: {}]
  %s2 = inlined_call_operand.vmem [shape: bf16[2,256], index: 2, kind: input, shape index: {}]
  %s3 = inlined_call_operand.hbm [shape: bf16[32,256], index: 3, kind: input, shape index: {}]
  %s4 = inlined_call_operand.vmem [shape: bf16[256,128], index: 4, kind: input, shape index: {}]
  %s5 = inlined_call_operand.vmem [shape: f32[1,128], index: 5, kind: input, shape index: {}]
  %s6 = inlined_call_operand.vmem [shape: bf16[128,64], index: 6, kind: input, shape index: {}]
  %s7 = inlined_call_operand.vmem [shape: f32[1,64], index: 7, kind: input, shape index: {}]
  %s8 = inlined_call_operand.vmem [shape: f32[1,64], index: 8, kind: input, shape index: {}]
  %s9 = inlined_call_operand.<no memory space> [shape: f32[1,1], index: 9, kind: input, shape index: {}]
  %s10 = inlined_call_operand.vmem [shape: s32[16,1], index: 10, kind: output, shape index: {}]
  %s11 = sld [smem:[#allocation0]]
  $region58: #{tpu_custom_call.1} parent=0
    _
  %s13 = ssub.s32 1, %s11
  %s14 = scalar_select 0, %s13, %s11
  %v15 = vstv %s9
  %16 = vst [vmem:[#allocation2] sm:$0x1] %v15
  $region1: #{tpu_custom_call.1} parent=0
    #allocation3 [shape = 'u8[8192]{0}', space=vmem, size = 0x2000, scoped, tag = 'input window, operand 1, single buffered']
    #allocation4 [shape = 's32[1]{0}', space=sflag, size = 0x4, scoped, tag = 'scoped memory for tpu_custom_call.1']
    #allocation5 [shape = 'u8[16384]{0}', space=vmem, size = 0x4000, scoped, tag = 'input window, operand 3, single buffered']
    #allocation6 [shape = 's32[1]{0}', space=sflag, size = 0x4, scoped, tag = 'scoped memory for tpu_custom_call.1']
    %17 = vsyncpa [#allocation4], 0
    %18 = vsyncpa [#allocation6], 0
    // Predicated region
    $region2: #{tpu_custom_call.1} parent=1 // pred_check
      _
    $region3: #{tpu_custom_call.1} parent=1 // pred_check_branch
      %20 = sbr.rel (0) target = $region5
    $region4: #{tpu_custom_call.1} parent=1 // pred_region
      _
    $region5: #{tpu_custom_call.1} parent=1 // pred_fallthru
      _
    // Predicated region
    $region6: #{tpu_custom_call.1} parent=1 // pred_check
      _
    $region7: #{tpu_custom_call.1} parent=1 // pred_check_branch
      %22 = sbr.rel (0) target = $region9
    $region8: #{tpu_custom_call.1} parent=1 // pred_region
      %s24 = ssub.s32 256, 256
      %25 = vsyncadd [#allocation4], %s24
      %s26 = sshll.u32 [#allocation3], 4
      %s27 = int_to_ptr.vmem [resolvable:$true] %s26
      %32 = dma.hbm_to_vmem [thread:$0]  %s1, 256, %s27, [#allocation4], 128, 128, 8
    $region9: #{tpu_custom_call.1} parent=1 // pred_fallthru
      _
    // Predicated region
    $region10: #{tpu_custom_call.1} parent=1 // pred_check
      _
    $region11: #{tpu_custom_call.1} parent=1 // pred_check_branch
      %34 = sbr.rel (0) target = $region13
    $region12: #{tpu_custom_call.1} parent=1 // pred_region
      _
    $region13: #{tpu_custom_call.1} parent=1 // pred_fallthru
      _
    // Predicated region
    $region14: #{tpu_custom_call.1} parent=1 // pred_check
      _
    $region15: #{tpu_custom_call.1} parent=1 // pred_check_branch
      %36 = sbr.rel (0) target = $region17
    $region16: #{tpu_custom_call.1} parent=1 // pred_region
      %s38 = ssub.s32 512, 512
      %39 = vsyncadd [#allocation6], %s38
      %s40 = sshll.u32 [#allocation5], 4
      %s41 = int_to_ptr.vmem [resolvable:$true] %s40
      %46 = dma.hbm_to_vmem [thread:$0]  %s3, 512, %s41, [#allocation6], 128, 128, 8
    $region17: #{tpu_custom_call.1} parent=1 // pred_fallthru
      _
    // Predicated region
    $region18: #{tpu_custom_call.1} parent=1 // pred_check
      _
    $region19: #{tpu_custom_call.1} parent=1 // pred_check_branch
      %48 = sbr.rel (0) target = $region21
    $region20: #{tpu_custom_call.1} parent=1 // pred_region
      _
    $region21: #{tpu_custom_call.1} parent=1 // pred_fallthru
      _
    // Predicated region
    $region22: #{tpu_custom_call.1} parent=1 // pred_check
      _
    $region23: #{tpu_custom_call.1} parent=1 // pred_check_branch
      %50 = sbr.rel (0) target = $region25
    $region24: #{tpu_custom_call.1} parent=1 // pred_region
      _
    $region25: #{tpu_custom_call.1} parent=1 // pred_fallthru
      _
    // Predicated region
    $region26: #{tpu_custom_call.1} parent=1 // pred_check
      _
    $region27: #{tpu_custom_call.1} parent=1 // pred_check_branch
      %52 = sbr.rel (0) target = $region29
    $region28: #{tpu_custom_call.1} parent=1 // pred_region
      _
    $region29: #{tpu_custom_call.1} parent=1 // pred_fallthru
      _
    // Predicated region
    $region30: #{tpu_custom_call.1} parent=1 // pred_check
      _
    $region31: #{tpu_custom_call.1} parent=1 // pred_check_branch
      %54 = sbr.rel (0) target = $region33
    $region32: #{tpu_custom_call.1} parent=1 // pred_region
      _
    $region33: #{tpu_custom_call.1} parent=1 // pred_fallthru
      _
    // Predicated region
    $region34: #{tpu_custom_call.1} parent=1 // pred_check
      _
    $region35: #{tpu_custom_call.1} parent=1 // pred_check_branch
      %56 = sbr.rel (0) target = $region37
    $region36: #{tpu_custom_call.1} parent=1 // pred_region
      _
    $region37: #{tpu_custom_call.1} parent=1 // pred_fallthru
      _
    // Predicated region
    $region38: #{tpu_custom_call.1} parent=1 // pred_check
      _
    $region39: #{tpu_custom_call.1} parent=1 // pred_check_branch
      %58 = sbr.rel (0) target = $region41
    $region40: #{tpu_custom_call.1} parent=1 // pred_region
      _
    $region41: #{tpu_custom_call.1} parent=1 // pred_fallthru
      _
    // Predicated region
    $region42: #{tpu_custom_call.1} parent=1 // pred_check
      _
    $region43: #{tpu_custom_call.1} parent=1 // pred_check_branch
      %60 = sbr.rel (0) target = $region45
    $region44: #{tpu_custom_call.1} parent=1 // pred_region
      %61 = dma.done [#allocation4], 256
    $region45: #{tpu_custom_call.1} parent=1 // pred_fallthru
      _
    // Predicated region
    $region46: #{tpu_custom_call.1} parent=1 // pred_check
      _
    $region47: #{tpu_custom_call.1} parent=1 // pred_check_branch
      %63 = sbr.rel (0) target = $region49
    $region48: #{tpu_custom_call.1} parent=1 // pred_region
      %64 = dma.done [#allocation6], 512
    $region49: #{tpu_custom_call.1} parent=1 // pred_fallthru
      _
    %v66 = vld [vmem:[%s0] sm:$0xff]
    %v67 = vld [vmem:[%s0 + $0x8] sm:$0xff]
    %v68 = vlaneseq
    %v69 = vand.u32 %v68, 127
    %70 = vset.pattern.permute.xlu0 0
    %71 = vperm.xlu0 %70, %v66
    %v72 = vpop.permute.xlu0 %71
    %73 = vset.pattern.permute.xlu0 0
    %74 = vperm.xlu0 %73, %v67
    %v75 = vpop.permute.xlu0 %74
    %vm76 = vcmp.eq.s32.totalorder %v72, %v69
    %vm77 = vcmp.eq.s32.totalorder %v75, %v69
    %v78 = vsel %vm76, 1, 0
    %v79 = vsel %vm77, 1, 0
    %v80 = vcvt.s32.f32 %v78
    %v81 = vcvt.s32.f32 %v79
    %v82 = vpack.c.bf16 %v81, %v80
    %v83 = vld [vmem:[%s2] sm:$0x3]
    %v86 = vunpack.c.l.s4 1966171168
    %v87 = vunpack.c.0.s8 %v86
    %v88 = vlaneseq
    %v89 = vshrl.u32 %v88, 7
    %v90 = vsub.s32 %v87, %v89
    %v91 = vrot.slane %v83, %v90
    %v92 = vcombine.high %v91, %v91
    %v94 = vunpack.c.l.s4 1966171168
    %v95 = vunpack.c.0.s8 %v94
    %v96 = vlaneseq
    %v97 = vshrl.u32 %v96, 7
    %v98 = vsub.s32 %v95, %v97
    %v99 = vrot.slane %v91, %v98
    %v101 = vunpack.c.l.s4 1966171168
    %v102 = vunpack.c.0.s8 %v101
    %v103 = vlaneseq
    %v104 = vshrl.u32 %v103, 7
    %v105 = vsub.s32 %v102, %v104
    %v106 = vrot.slane %v92, %v105
    %vm107 = vcmask 15360
    %v109 = vsel %vm107, %v82, 0
    %vm111 = vcmask 1040384
    %v113 = vsel %vm111, %v99, 0
    %v116 = vsel %vm111, %v106, 0
    %118 = vmatprep.subr.bf16.mxu0 %v116
    %119 = vmatpush1.bf16.msra.mxu0 %v113
    %120 = vmatprep.subr.bf16.mxu0 0
    %121 = vmatpush1.bf16.msra.mxu0 0
    %122 = vmatprep.subr.bf16.mxu0 0
    %123 = vmatpush1.bf16.msra.mxu0 0
    %124 = vmatprep.subr.bf16.mxu0 0
    %125 = vmatpush1.bf16.msra.mxu0 0
    %126 = vmatprep.subr.bf16.mxu0 0
    %127 = vmatpush1.bf16.msra.mxu0 0
    %128 = vmatprep.subr.bf16.mxu0 0
    %129 = vmatpush1.bf16.msra.mxu0 0
    %130 = vmatprep.subr.bf16.mxu0 0
    %131 = vmatpush1.bf16.msra.mxu0 0
    %132 = vmatprep.subr.bf16.mxu0 0
    %133 = vmatpush1.bf16.msra.mxu0 0
    %134 = vmatprep.subr.bf16.mxu0 0
    %135 = vmatpush1.bf16.msra.mxu0 0
    %136 = vmatprep.subr.bf16.mxu0 0
    %137 = vmatpush1.bf16.msra.mxu0 0
    %138 = vmatprep.subr.bf16.mxu0 0
    %139 = vmatpush1.bf16.msra.mxu0 0
    %140 = vmatprep.subr.bf16.mxu0 0
    %141 = vmatpush1.bf16.msra.mxu0 0
    %142 = vmatprep.subr.bf16.mxu0 0
    %143 = vmatpush1.bf16.msra.mxu0 0
    %144 = vmatprep.subr.bf16.mxu0 0
    %145 = vmatpush1.bf16.msra.mxu0 0
    %146 = vmatprep.subr.bf16.mxu0 0
    %147 = vmatpush1.bf16.msra.mxu0 0
    %148 = vmatprep.subr.bf16.mxu0 0
    %149 = vmatpush1.bf16.msra.mxu0 0
    %150 = vmatprep.mubr.bf16.mxu0 0
    %151 = vmatmul.mubr.bf16.gmra.mrb[0].mxu0 %v109
    %v152 = vpop.f32.mrb[0].mxu0
    %v153 = vadd.f32 0.0, %v152
    %v154 = vpop.f32.mrb[0].mxu0
    %v155 = vadd.f32 0.0, %v154
    %v156 = vpop.f32.mrb[0].mxu0
    %v157 = vadd.f32 0.0, %v156
    %v158 = vpop.f32.mrb[0].mxu0
    %v159 = vadd.f32 0.0, %v158
    %160 = vdwg.mxu0
    %v161 = vld [vmem:[#allocation3] sm:$0xff]
    %v162 = vld [vmem:[#allocation3 + $0x8] sm:$0xff]
    %v163 = vpack.c.bf16 %v162, %v161
    %v164 = vld [vmem:[#allocation5] sm:$0xff]
    %v165 = vld [vmem:[#allocation5 + $0x8] sm:$0xff]
    %v166 = vld [vmem:[#allocation5 + $0x10] sm:$0xff]
    %v167 = vld [vmem:[#allocation5 + $0x18] sm:$0xff]
    %v172 = vunpack.c.l.b16 %v164
    %v173 = vunpack.c.h.b16 %v164
    %v174 = vunpack.c.l.b16 %v165
    %v175 = vunpack.c.h.b16 %v165
    %v176 = vunpack.c.l.b16 %v166
    %v177 = vunpack.c.h.b16 %v166
    %v178 = vunpack.c.l.b16 %v167
    %v179 = vunpack.c.h.b16 %v167
    %v180 = vpack.c.b16 %v174, %v172
    %v181 = vpack.c.b16 %v175, %v173
    %v182 = vpack.c.b16 %v178, %v176
    %v183 = vpack.c.b16 %v179, %v177
    %vm188 = vcmask 261120
    %v190 = vsel %vm188, %v163, 0
    %192 = vmatprep.subr.bf16.mxu0 %v181
    %193 = vmatpush1.bf16.msra.mxu0 %v180
    %194 = vmatprep.subr.bf16.mxu0 %v183
    %195 = vmatpush1.bf16.msra.mxu0 %v182
    %196 = vmatprep.subr.bf16.mxu0 0
    %197 = vmatpush1.bf16.msra.mxu0 0
    %198 = vmatprep.subr.bf16.mxu0 0
    %199 = vmatpush1.bf16.msra.mxu0 0
    %200 = vmatprep.subr.bf16.mxu0 0
    %201 = vmatpush1.bf16.msra.mxu0 0
    %202 = vmatprep.subr.bf16.mxu0 0
    %203 = vmatpush1.bf16.msra.mxu0 0
    %204 = vmatprep.subr.bf16.mxu0 0
    %205 = vmatpush1.bf16.msra.mxu0 0
    %206 = vmatprep.subr.bf16.mxu0 0
    %207 = vmatpush1.bf16.msra.mxu0 0
    %208 = vmatprep.subr.bf16.mxu0 0
    %209 = vmatpush1.bf16.msra.mxu0 0
    %210 = vmatprep.subr.bf16.mxu0 0
    %211 = vmatpush1.bf16.msra.mxu0 0
    %212 = vmatprep.subr.bf16.mxu0 0
    %213 = vmatpush1.bf16.msra.mxu0 0
    %214 = vmatprep.subr.bf16.mxu0 0
    %215 = vmatpush1.bf16.msra.mxu0 0
    %216 = vmatprep.subr.bf16.mxu0 0
    %217 = vmatpush1.bf16.msra.mxu0 0
    %218 = vmatprep.subr.bf16.mxu0 0
    %219 = vmatpush1.bf16.msra.mxu0 0
    %220 = vmatprep.subr.bf16.mxu0 0
    %221 = vmatpush1.bf16.msra.mxu0 0
    %222 = vmatprep.subr.bf16.mxu0 0
    %223 = vmatpush1.bf16.msra.mxu0 0
    %224 = vmatprep.mubr.bf16.mxu0 0
    %225 = vmatmul.mubr.bf16.gmra.mrb[0].mxu0 %v190
    %v226 = vpop.f32.mrb[0].mxu0
    %v227 = vadd.f32 %v153, %v226
    %v228 = vpop.f32.mrb[0].mxu0
    %v229 = vadd.f32 %v155, %v228
    %v230 = vpop.f32.mrb[0].mxu0
    %v231 = vadd.f32 %v157, %v230
    %v232 = vpop.f32.mrb[0].mxu0
    %v233 = vadd.f32 %v159, %v232
    %234 = vdwg.mxu0
    %v235 = vmax.f32 %v227, 0.0
    %v236 = vmax.f32 %v229, 0.0
    %v237 = vmax.f32 %v231, 0.0
    %v238 = vmax.f32 %v233, 0.0
    %v239 = vpack.c.bf16 %v237, %v235
    %v240 = vpack.c.bf16 %v238, %v236
    %v241 = vld [vmem:[%s4] sm:$0xf]
    %v242 = vld [vmem:[%s4 + $0x4] sm:$0xf]
    %v243 = vld [vmem:[%s4 + $0x8] sm:$0xf]
    %v244 = vld [vmem:[%s4 + $0xc] sm:$0xf]
    %v245 = vld [vmem:[%s4 + $0x10] sm:$0xf]
    %v246 = vld [vmem:[%s4 + $0x14] sm:$0xf]
    %v247 = vld [vmem:[%s4 + $0x18] sm:$0xf]
    %v248 = vld [vmem:[%s4 + $0x1c] sm:$0xf]
    %v249 = vld [vmem:[%s4 + $0x20] sm:$0xf]
    %v250 = vld [vmem:[%s4 + $0x24] sm:$0xf]
    %v251 = vld [vmem:[%s4 + $0x28] sm:$0xf]
    %v252 = vld [vmem:[%s4 + $0x2c] sm:$0xf]
    %v253 = vld [vmem:[%s4 + $0x30] sm:$0xf]
    %v254 = vld [vmem:[%s4 + $0x34] sm:$0xf]
    %v255 = vld [vmem:[%s4 + $0x38] sm:$0xf]
    %v256 = vld [vmem:[%s4 + $0x3c] sm:$0xf]
    %v257 = vld [vmem:[%s4 + $0x40] sm:$0xf]
    %v258 = vld [vmem:[%s4 + $0x44] sm:$0xf]
    %v259 = vld [vmem:[%s4 + $0x48] sm:$0xf]
    %v260 = vld [vmem:[%s4 + $0x4c] sm:$0xf]
    %v261 = vld [vmem:[%s4 + $0x50] sm:$0xf]
    %v262 = vld [vmem:[%s4 + $0x54] sm:$0xf]
    %v263 = vld [vmem:[%s4 + $0x58] sm:$0xf]
    %v264 = vld [vmem:[%s4 + $0x5c] sm:$0xf]
    %v265 = vld [vmem:[%s4 + $0x60] sm:$0xf]
    %v266 = vld [vmem:[%s4 + $0x64] sm:$0xf]
    %v267 = vld [vmem:[%s4 + $0x68] sm:$0xf]
    %v268 = vld [vmem:[%s4 + $0x6c] sm:$0xf]
    %v269 = vld [vmem:[%s4 + $0x70] sm:$0xf]
    %v270 = vld [vmem:[%s4 + $0x74] sm:$0xf]
    %v271 = vld [vmem:[%s4 + $0x78] sm:$0xf]
    %v272 = vld [vmem:[%s4 + $0x7c] sm:$0xf]
    %v273 = vld [vmem:[%s5] sm:$0x1]
    %v275 = vlaneseq
    %v276 = vshrl.u32 %v275, 7
    %v277 = vsub.s32 0, %v276
    %v278 = vrot.slane %v273, %v277
    %v312 = vunpack.c.l.b16 %v241
    %v313 = vunpack.c.l.b16 %v242
    %v314 = vunpack.c.l.b16 %v243
    %v315 = vunpack.c.l.b16 %v244
    %v316 = vunpack.c.l.b16 %v245
    %v317 = vunpack.c.l.b16 %v246
    %v318 = vunpack.c.l.b16 %v247
    %v319 = vunpack.c.l.b16 %v248
    %v320 = vunpack.c.l.b16 %v249
    %v321 = vunpack.c.l.b16 %v250
    %v322 = vunpack.c.l.b16 %v251
    %v323 = vunpack.c.l.b16 %v252
    %v324 = vunpack.c.l.b16 %v253
    %v325 = vunpack.c.l.b16 %v254
    %v326 = vunpack.c.l.b16 %v255
    %v327 = vunpack.c.l.b16 %v256
    %v328 = vunpack.c.l.b16 %v257
    %v329 = vunpack.c.l.b16 %v258
    %v330 = vunpack.c.l.b16 %v259
    %v331 = vunpack.c.l.b16 %v260
    %v332 = vunpack.c.l.b16 %v261
    %v333 = vunpack.c.l.b16 %v262
    %v334 = vunpack.c.l.b16 %v263
    %v335 = vunpack.c.l.b16 %v264
    %v336 = vunpack.c.l.b16 %v265
    %v337 = vunpack.c.l.b16 %v266
    %v338 = vunpack.c.l.b16 %v267
    %v339 = vunpack.c.l.b16 %v268
    %v340 = vunpack.c.l.b16 %v269
    %v341 = vunpack.c.l.b16 %v270
    %v342 = vunpack.c.l.b16 %v271
    %v343 = vunpack.c.l.b16 %v272
    %v344 = vpack.c.b16 %v313, %v312
    %v345 = vpack.c.b16 %v315, %v314
    %v346 = vpack.c.b16 %v317, %v316
    %v347 = vpack.c.b16 %v319, %v318
    %v348 = vpack.c.b16 %v321, %v320
    %v349 = vpack.c.b16 %v323, %v322
    %v350 = vpack.c.b16 %v325, %v324
    %v351 = vpack.c.b16 %v327, %v326
    %v352 = vpack.c.b16 %v329, %v328
    %v353 = vpack.c.b16 %v331, %v330
    %v354 = vpack.c.b16 %v333, %v332
    %v355 = vpack.c.b16 %v335, %v334
    %v356 = vpack.c.b16 %v337, %v336
    %v357 = vpack.c.b16 %v339, %v338
    %v358 = vpack.c.b16 %v341, %v340
    %v359 = vpack.c.b16 %v343, %v342
    %376 = vmatprep.subr.bf16.mxu0 0
    %377 = vmatpush1.bf16.msra.mxu0 %v344
    %378 = vmatprep.subr.bf16.mxu0 0
    %379 = vmatpush1.bf16.msra.mxu0 %v345
    %380 = vmatprep.subr.bf16.mxu0 0
    %381 = vmatpush1.bf16.msra.mxu0 %v346
    %382 = vmatprep.subr.bf16.mxu0 0
    %383 = vmatpush1.bf16.msra.mxu0 %v347
    %384 = vmatprep.subr.bf16.mxu0 0
    %385 = vmatpush1.bf16.msra.mxu0 %v348
    %386 = vmatprep.subr.bf16.mxu0 0
    %387 = vmatpush1.bf16.msra.mxu0 %v349
    %388 = vmatprep.subr.bf16.mxu0 0
    %389 = vmatpush1.bf16.msra.mxu0 %v350
    %390 = vmatprep.subr.bf16.mxu0 0
    %391 = vmatpush1.bf16.msra.mxu0 %v351
    %392 = vmatprep.subr.bf16.mxu0 0
    %393 = vmatpush1.bf16.msra.mxu0 %v352
    %394 = vmatprep.subr.bf16.mxu0 0
    %395 = vmatpush1.bf16.msra.mxu0 %v353
    %396 = vmatprep.subr.bf16.mxu0 0
    %397 = vmatpush1.bf16.msra.mxu0 %v354
    %398 = vmatprep.subr.bf16.mxu0 0
    %399 = vmatpush1.bf16.msra.mxu0 %v355
    %400 = vmatprep.subr.bf16.mxu0 0
    %401 = vmatpush1.bf16.msra.mxu0 %v356
    %402 = vmatprep.subr.bf16.mxu0 0
    %403 = vmatpush1.bf16.msra.mxu0 %v357
    %404 = vmatprep.subr.bf16.mxu0 0
    %405 = vmatpush1.bf16.msra.mxu0 %v358
    %406 = vmatprep.subr.bf16.mxu0 0
    %407 = vmatpush1.bf16.msra.mxu0 %v359
    %408 = vmatprep.mubr.bf16.mxu0 %v240
    %409 = vmatmul.mubr.bf16.gmra.mrb[0].mxu0 %v239
    %v410 = vpop.f32.mrb[0].mxu0
    %v411 = vadd.f32 %v278, %v410
    %v412 = vpop.f32.mrb[0].mxu0
    %v413 = vpop.f32.mrb[0].mxu0
    %v414 = vadd.f32 %v278, %v413
    %v415 = vpop.f32.mrb[0].mxu0
    %416 = vdwg.mxu0
    %v417 = vmax.f32 %v411, 0.0
    %v418 = vmax.f32 %v414, 0.0
    %v419 = vpack.c.bf16 %v418, %v417
    %v420 = vld [vmem:[%s6] sm:$0xf]
    %v421 = vld [vmem:[%s6 + $0x4] sm:$0xf]
    %v422 = vld [vmem:[%s6 + $0x8] sm:$0xf]
    %v423 = vld [vmem:[%s6 + $0xc] sm:$0xf]
    %v424 = vld [vmem:[%s6 + $0x10] sm:$0xf]
    %v425 = vld [vmem:[%s6 + $0x14] sm:$0xf]
    %v426 = vld [vmem:[%s6 + $0x18] sm:$0xf]
    %v427 = vld [vmem:[%s6 + $0x1c] sm:$0xf]
    %v428 = vld [vmem:[%s6 + $0x20] sm:$0xf]
    %v429 = vld [vmem:[%s6 + $0x24] sm:$0xf]
    %v430 = vld [vmem:[%s6 + $0x28] sm:$0xf]
    %v431 = vld [vmem:[%s6 + $0x2c] sm:$0xf]
    %v432 = vld [vmem:[%s6 + $0x30] sm:$0xf]
    %v433 = vld [vmem:[%s6 + $0x34] sm:$0xf]
    %v434 = vld [vmem:[%s6 + $0x38] sm:$0xf]
    %v435 = vld [vmem:[%s6 + $0x3c] sm:$0xf]
    %v436 = vld [vmem:[%s7] sm:$0x1]
    %v438 = vlaneseq
    %v439 = vshrl.u32 %v438, 7
    %v440 = vsub.s32 0, %v439
    %v441 = vrot.slane %v436, %v440
    %v459 = vunpack.c.l.b16 %v420
    %v460 = vunpack.c.l.b16 %v421
    %v461 = vunpack.c.l.b16 %v422
    %v462 = vunpack.c.l.b16 %v423
    %v463 = vunpack.c.l.b16 %v424
    %v464 = vunpack.c.l.b16 %v425
    %v465 = vunpack.c.l.b16 %v426
    %v466 = vunpack.c.l.b16 %v427
    %v467 = vunpack.c.l.b16 %v428
    %v468 = vunpack.c.l.b16 %v429
    %v469 = vunpack.c.l.b16 %v430
    %v470 = vunpack.c.l.b16 %v431
    %v471 = vunpack.c.l.b16 %v432
    %v472 = vunpack.c.l.b16 %v433
    %v473 = vunpack.c.l.b16 %v434
    %v474 = vunpack.c.l.b16 %v435
    %v475 = vpack.c.b16 %v460, %v459
    %v476 = vpack.c.b16 %v462, %v461
    %v477 = vpack.c.b16 %v464, %v463
    %v478 = vpack.c.b16 %v466, %v465
    %v479 = vpack.c.b16 %v468, %v467
    %v480 = vpack.c.b16 %v470, %v469
    %v481 = vpack.c.b16 %v472, %v471
    %v482 = vpack.c.b16 %v474, %v473
    %491 = vmatprep.subr.bf16.mxu0 0
    %492 = vmatpush1.bf16.msra.mxu0 %v475
    %493 = vmatprep.subr.bf16.mxu0 0
    %494 = vmatpush1.bf16.msra.mxu0 %v476
    %495 = vmatprep.subr.bf16.mxu0 0
    %496 = vmatpush1.bf16.msra.mxu0 %v477
    %497 = vmatprep.subr.bf16.mxu0 0
    %498 = vmatpush1.bf16.msra.mxu0 %v478
    %499 = vmatprep.subr.bf16.mxu0 0
    %500 = vmatpush1.bf16.msra.mxu0 %v479
    %501 = vmatprep.subr.bf16.mxu0 0
    %502 = vmatpush1.bf16.msra.mxu0 %v480
    %503 = vmatprep.subr.bf16.mxu0 0
    %504 = vmatpush1.bf16.msra.mxu0 %v481
    %505 = vmatprep.subr.bf16.mxu0 0
    %506 = vmatpush1.bf16.msra.mxu0 %v482
    %507 = vmatprep.subr.bf16.mxu0 0
    %508 = vmatpush1.bf16.msra.mxu0 0
    %509 = vmatprep.subr.bf16.mxu0 0
    %510 = vmatpush1.bf16.msra.mxu0 0
    %511 = vmatprep.subr.bf16.mxu0 0
    %512 = vmatpush1.bf16.msra.mxu0 0
    %513 = vmatprep.subr.bf16.mxu0 0
    %514 = vmatpush1.bf16.msra.mxu0 0
    %515 = vmatprep.subr.bf16.mxu0 0
    %516 = vmatpush1.bf16.msra.mxu0 0
    %517 = vmatprep.subr.bf16.mxu0 0
    %518 = vmatpush1.bf16.msra.mxu0 0
    %519 = vmatprep.subr.bf16.mxu0 0
    %520 = vmatpush1.bf16.msra.mxu0 0
    %521 = vmatprep.subr.bf16.mxu0 0
    %522 = vmatpush1.bf16.msra.mxu0 0
    %523 = vmatprep.mubr.bf16.mxu0 0
    %524 = vmatmul.mubr.bf16.gmra.mrb[0].mxu0 %v419
    %v525 = vpop.f32.mrb[0].mxu0
    %v526 = vadd.f32 %v441, %v525
    %v527 = vpop.f32.mrb[0].mxu0
    %v528 = vpop.f32.mrb[0].mxu0
    %v529 = vadd.f32 %v441, %v528
    %v530 = vpop.f32.mrb[0].mxu0
    %531 = vdwg.mxu0
    %v532 = vmax.f32 %v526, 0.0
    %v533 = vmax.f32 %v529, 0.0
    %v534 = vld [vmem:[%s8] sm:$0x1]
    %v536 = vlaneseq
    %v537 = vshrl.u32 %v536, 7
    %v538 = vsub.s32 0, %v537
    %v539 = vrot.slane %v534, %v538
    %v541 = vmul.f32 %v532, %v539
    %v542 = vmul.f32 %v533, %v539
    %vm543 = vcmask 523264
    %v544 = vsel %vm543, %v541, 0.0
    %545 = vadd.xlane.f32.xlu0 %v544
    %v546 = vpop.xlane.xlu0 %545
    %v547 = vsel %vm543, %v542, 0.0
    %548 = vadd.xlane.f32.xlu0 %v547
    %v549 = vpop.xlane.xlu0 %548
    %v550 = vld [vmem:[#allocation2] sm:$0x1]
    %v552 = vlaneseq
    %v553 = vshrl.u32 %v552, 7
    %v554 = vsub.s32 0, %v553
    %v555 = vrot.slane %v550, %v554
    %v557 = vadd.f32 %v546, %v555
    %v558 = vadd.f32 %v549, %v555
    %vm559 = vcmp.ge.f32.partialorder %v557, 0.0
    %vm560 = vcmp.ge.f32.partialorder %v558, 0.0
    %v561 = vsel %vm559, 1, 0
    %v562 = vsel %vm560, 1, 0
    %vm563 = vcmask 7168
    %564 = vst.msk [vmem:[%s10] sm:$0xff] %vm563, %v561
    %565 = vst.msk [vmem:[%s10 + $0x8] sm:$0xff] %vm563, %v562
    // Predicated region
    $region50: #{tpu_custom_call.1} parent=1 // pred_check
      _
    $region51: #{tpu_custom_call.1} parent=1 // pred_check_branch
      %567 = sbr.rel (0) target = $region53
    $region52: #{tpu_custom_call.1} parent=1 // pred_region
      _
    $region53: #{tpu_custom_call.1} parent=1 // pred_fallthru
      _
    // Predicated region
    $region54: #{tpu_custom_call.1} parent=1 // pred_check
      _
    $region55: #{tpu_custom_call.1} parent=1 // pred_check_branch
      %569 = sbr.rel (0) target = $region57
    $region56: #{tpu_custom_call.1} parent=1 // pred_region
      _
    $region57: #{tpu_custom_call.1} parent=1 // pred_fallthru
      _
    %570 = vsyncpa [#allocation4], 1
    %571 = vsyncpa [#allocation6], 1

</llo_original>
